<compile_context>
chip_gen: v7x
topology: tpu7x:2x2x1
jax: 0.10.0
libtpu: 0.0.40
codegen_flags: <defaults>
</compile_context>

<pallas_src>
import functools
import math

import jax
import jax.numpy as jnp
from jax.experimental import pallas as pl
from jax.experimental.pallas import tpu as pltpu

LANE = 128         # lane width: hidden dim padded to a multiple of this
HEAD_HALF = 64     # packed head: mean -> lanes [0,64), log_std -> lanes [64,128)


def _round_up(x, m):
    return ((x + m - 1) // m) * m


def _policy_kernel(x_ref, w1_ref, b1_ref, w2_ref, b2_ref, wh_ref, bh_ref,
                   out_ref, *, half, log_std_min, log_std_max):
    # One batch tile (tm, d_in); all weights are full, lane-padded, resident.
    x = x_ref[...]

    h1 = jnp.dot(x, w1_ref[...], preferred_element_type=jnp.float32) + b1_ref[...]
    h1 = jnp.maximum(h1, 0.0)

    h2 = jnp.dot(h1, w2_ref[...], preferred_element_type=jnp.float32) + b2_ref[...]
    h2 = jnp.maximum(h2, 0.0)

    # Packed heads: one (tm, H_pad) x (H_pad, 2*half) matmul produces both
    # mean (lanes [0, half)) and log_std (lanes [half, 2*half)).
    heads = jnp.dot(h2, wh_ref[...], preferred_element_type=jnp.float32) + bh_ref[...]

    # Clamp only the log_std lanes (cheap VPU select; MXU has plenty of slack).
    col = jax.lax.broadcasted_iota(jnp.int32, heads.shape, 1)
    clamped = jnp.clip(heads, log_std_min, log_std_max)
    out_ref[...] = jnp.where(col >= half, clamped, heads)


def policy_forward(state, kernel_params, num_actions, *,
                   tm=None, log_std_min=-20.0, log_std_max=2.0):
    """Pallas forward of PolicyNetwork.forward. Returns (mean, log_std)."""
    state = state.astype(jnp.float32)
    b, d_in = state.shape

    w1p, b1p, w2p, b2p, whp, bhp = kernel_params
    packed = whp.shape[1]        # 2 * half
    half = packed // 2

    # Batch tiling: one grid step for small batches; cap tm at 256 (MXU-native
    # M on v6e/v7x) for large batches.  Never over-tile a tiny batch.
    if tm is None:
        tm = _round_up(b, 8) if b <= 256 else 256
    tm = max(8, _round_up(tm, 8))
    b_pad = _round_up(b, tm)
    if b_pad != b:
        state = jnp.pad(state, ((0, b_pad - b), (0, 0)))

    grid = (b_pad // tm,)

    # Weights/biases: block index constant across the batch grid -> resident
    # in VMEM, DMA'd once.
    resident = lambda shape: pl.BlockSpec(shape, lambda i: (0, 0))
    in_specs = [
        pl.BlockSpec((tm, d_in), lambda i: (i, 0)),  # state tile (pipelined)
        resident(w1p.shape), resident(b1p.shape),
        resident(w2p.shape), resident(b2p.shape),
        resident(whp.shape), resident(bhp.shape),
    ]
    out_specs = pl.BlockSpec((tm, packed), lambda i: (i, 0))
    out_shape = jax.ShapeDtypeStruct((b_pad, packed), jnp.float32)

    kernel = functools.partial(
        _policy_kernel, half=half,
        log_std_min=log_std_min, log_std_max=log_std_max)

    out = pl.pallas_call(
        kernel,
        out_shape=out_shape,
        grid_spec=pltpu.PrefetchScalarGridSpec(
            num_scalar_prefetch=0,
            grid=grid,
            in_specs=in_specs,
            out_specs=out_specs,
        ),
        compiler_params=pltpu.CompilerParams(
            dimension_semantics=("parallel",)),
    )(state, w1p, b1p, w2p, b2p, whp, bhp)

    mean = out[:b, :num_actions]
    log_std = out[:b, half:half + num_actions]
    return mean, log_std


def init_params(key, num_inputs, num_actions, hidden_size, init_w=0.003):
    """Unpadded params mirroring the PyTorch module's __init__.

    linear1/linear2: PyTorch default nn.Linear init U(-1/sqrt(fan_in), ...)
    for weight and bias. mean_linear/log_std_linear: U(-init_w, init_w).
    Weights stored pre-transposed (in_features, out_features); biases (1, out).
    """
    k1, k2, k3, k4, k5, k6, k7, k8 = jax.random.split(key, 8)

    bound1 = 1.0 / math.sqrt(num_inputs)
    w1t = jax.random.uniform(k1, (num_inputs, hidden_size), jnp.float32, -bound1, bound1)
    b1 = jax.random.uniform(k2, (1, hidden_size), jnp.float32, -bound1, bound1)

    bound2 = 1.0 / math.sqrt(hidden_size)
    w2t = jax.random.uniform(k3, (hidden_size, hidden_size), jnp.float32, -bound2, bound2)
    b2 = jax.random.uniform(k4, (1, hidden_size), jnp.float32, -bound2, bound2)

    wmt = jax.random.uniform(k5, (hidden_size, num_actions), jnp.float32, -init_w, init_w)
    bm = jax.random.uniform(k6, (1, num_actions), jnp.float32, -init_w, init_w)

    wst = jax.random.uniform(k7, (hidden_size, num_actions), jnp.float32, -init_w, init_w)
    bs = jax.random.uniform(k8, (1, num_actions), jnp.float32, -init_w, init_w)

    return (w1t, b1, w2t, b2, wmt, bm, wst, bs)


def pad_params(params):
    """Pad hidden dim to a multiple of 128 lanes and pack the two heads.

    Packed head weight (H_pad, 2*half): mean head in lanes [0, A),
    log_std head in lanes [half, half + A).  half = round_up(A, 64) so the
    packed width is a multiple of 128.  All padding is zeros (math-inert).
    """
    w1t, b1, w2t, b2, wmt, bm, wst, bs = params
    h = w1t.shape[1]
    a = wmt.shape[1]
    h_pad = _round_up(h, LANE)
    half = _round_up(a, HEAD_HALF)
    ph = h_pad - h

    w1p = jnp.pad(w1t, ((0, 0), (0, ph)))
    b1p = jnp.pad(b1, ((0, 0), (0, ph)))
    w2p = jnp.pad(w2t, ((0, ph), (0, ph)))
    b2p = jnp.pad(b2, ((0, 0), (0, ph)))

    whp = jnp.zeros((h_pad, 2 * half), jnp.float32)
    whp = whp.at[:h, :a].set(wmt)
    whp = whp.at[:h, half:half + a].set(wst)
    bhp = jnp.zeros((1, 2 * half), jnp.float32)
    bhp = bhp.at[:, :a].set(bm)
    bhp = bhp.at[:, half:half + a].set(bs)

    return (w1p, b1p, w2p, b2p, whp, bhp)


def _reference_forward(state, params, log_std_min=-20.0, log_std_max=2.0):
    """Pure-JAX reference (unpadded weights) for correctness check."""
    w1t, b1, w2t, b2, wmt, bm, wst, bs = params
    x = jnp.maximum(state @ w1t + b1, 0.0)
    x = jnp.maximum(x @ w2t + b2, 0.0)
    mean = x @ wmt + bm
    log_std = jnp.clip(x @ wst + bs, log_std_min, log_std_max)
    return mean, log_std


if __name__ == "__main__":
    # Small shapes consistent with the module: state dim, action dim, hidden.
    batch = 32
    num_inputs = 9
    num_actions = 3
    hidden_size = 32

    key = jax.random.PRNGKey(0)
    k_params, k_state = jax.random.split(key)

    raw_params = init_params(k_params, num_inputs, num_actions, hidden_size)
    kernel_params = pad_params(raw_params)
    state = jax.random.normal(k_state, (batch, num_inputs), jnp.float32)

    # Default tm -> single grid step for B=32 (no over-tiling).
    mean, log_std = policy_forward(state, kernel_params, num_actions)
    mean, log_std = jax.block_until_ready((mean, log_std))

    ref_mean, ref_log_std = _reference_forward(state, raw_params)
    assert mean.shape == (batch, num_actions), mean.shape
    assert log_std.shape == (batch, num_actions), log_std.shape
    assert jnp.allclose(mean, ref_mean, atol=1e-5, rtol=1e-5)
    assert jnp.allclose(log_std, ref_log_std, atol=1e-5, rtol=1e-5)

    print("KERNEL_OK")
</pallas_src>

<mosaic_0001>
module attributes {stable_mosaic.version = 11 : i64} {
  func.func @_policy_kernel(%arg0: i32, %arg1: memref<32x9xf32, #tpu.memory_space<vmem>>, %arg2: memref<9x128xf32, #tpu.memory_space<vmem>>, %arg3: memref<1x128xf32, #tpu.memory_space<vmem>>, %arg4: memref<128x128xf32, #tpu.memory_space<vmem>>, %arg5: memref<1x128xf32, #tpu.memory_space<vmem>>, %arg6: memref<128x128xf32, #tpu.memory_space<vmem>>, %arg7: memref<1x128xf32, #tpu.memory_space<vmem>>, %arg8: memref<32x128xf32, #tpu.memory_space<vmem>>) attributes {dimension_semantics = [#tpu.dimension_semantics<parallel>], iteration_bounds = array<i64: 1>, scalar_prefetch = 0 : i64, scratch_operands = 0 : i64, tpu.core_type = #tpu.core_type<tc>, window_params = [{transform_indices = @transform_0, window_bounds = array<i64: 32, 9>}, {pipeline_mode = #tpu.pipeline_mode<synchronous>, transform_indices = @transform_1, window_bounds = array<i64: 9, 128>}, {pipeline_mode = #tpu.pipeline_mode<synchronous>, transform_indices = @transform_2, window_bounds = array<i64: 1, 128>}, {pipeline_mode = #tpu.pipeline_mode<synchronous>, transform_indices = @transform_3, window_bounds = array<i64: 128, 128>}, {pipeline_mode = #tpu.pipeline_mode<synchronous>, transform_indices = @transform_4, window_bounds = array<i64: 1, 128>}, {pipeline_mode = #tpu.pipeline_mode<synchronous>, transform_indices = @transform_5, window_bounds = array<i64: 128, 128>}, {pipeline_mode = #tpu.pipeline_mode<synchronous>, transform_indices = @transform_6, window_bounds = array<i64: 1, 128>}, {transform_indices = @transform_7, window_bounds = array<i64: 32, 128>}]} {
    %c0 = arith.constant 0 : index
    %c0_0 = arith.constant 0 : index
    %0 = vector.load %arg1[%c0, %c0_0] : memref<32x9xf32, #tpu.memory_space<vmem>>, vector<32x9xf32>
    %c0_1 = arith.constant 0 : index
    %c0_2 = arith.constant 0 : index
    %1 = vector.load %arg2[%c0_1, %c0_2] : memref<9x128xf32, #tpu.memory_space<vmem>>, vector<9x128xf32>
    %cst = arith.constant dense<0.000000e+00> : vector<32x128xf32>
    %2 = tpu.matmul %0, %1, %cst {dimension_numbers = #tpu.dot_dimension_numbers<[1], [0], [0], [1], [0, 0, 1, 1], [], []>} : vector<32x9xf32>, vector<9x128xf32>, vector<32x128xf32> -> vector<32x128xf32>
    %c0_3 = arith.constant 0 : index
    %c0_4 = arith.constant 0 : index
    %3 = vector.load %arg3[%c0_3, %c0_4] : memref<1x128xf32, #tpu.memory_space<vmem>>, vector<1x128xf32>
    %4 = vector.broadcast %3 : vector<1x128xf32> to vector<32x128xf32>
    %5 = arith.addf %2, %4 : vector<32x128xf32>
    %cst_5 = arith.constant 0.000000e+00 : f32
    %6 = vector.broadcast %cst_5 : f32 to vector<32x128xf32>
    %7 = arith.maximumf %5, %6 : vector<32x128xf32>
    %c0_6 = arith.constant 0 : index
    %c0_7 = arith.constant 0 : index
    %8 = vector.load %arg4[%c0_6, %c0_7] : memref<128x128xf32, #tpu.memory_space<vmem>>, vector<128x128xf32>
    %cst_8 = arith.constant dense<0.000000e+00> : vector<32x128xf32>
    %9 = tpu.matmul %7, %8, %cst_8 {dimension_numbers = #tpu.dot_dimension_numbers<[1], [0], [0], [1], [0, 0, 1, 1], [], []>} : vector<32x128xf32>, vector<128x128xf32>, vector<32x128xf32> -> vector<32x128xf32>
    %c0_9 = arith.constant 0 : index
    %c0_10 = arith.constant 0 : index
    %10 = vector.load %arg5[%c0_9, %c0_10] : memref<1x128xf32, #tpu.memory_space<vmem>>, vector<1x128xf32>
    %11 = vector.broadcast %10 : vector<1x128xf32> to vector<32x128xf32>
    %12 = arith.addf %9, %11 : vector<32x128xf32>
    %cst_11 = arith.constant 0.000000e+00 : f32
    %13 = vector.broadcast %cst_11 : f32 to vector<32x128xf32>
    %14 = arith.maximumf %12, %13 : vector<32x128xf32>
    %c0_12 = arith.constant 0 : index
    %c0_13 = arith.constant 0 : index
    %15 = vector.load %arg6[%c0_12, %c0_13] : memref<128x128xf32, #tpu.memory_space<vmem>>, vector<128x128xf32>
    %cst_14 = arith.constant dense<0.000000e+00> : vector<32x128xf32>
    %16 = tpu.matmul %14, %15, %cst_14 {dimension_numbers = #tpu.dot_dimension_numbers<[1], [0], [0], [1], [0, 0, 1, 1], [], []>} : vector<32x128xf32>, vector<128x128xf32>, vector<32x128xf32> -> vector<32x128xf32>
    %c0_15 = arith.constant 0 : index
    %c0_16 = arith.constant 0 : index
    %17 = vector.load %arg7[%c0_15, %c0_16] : memref<1x128xf32, #tpu.memory_space<vmem>>, vector<1x128xf32>
    %18 = vector.broadcast %17 : vector<1x128xf32> to vector<32x128xf32>
    %19 = arith.addf %16, %18 : vector<32x128xf32>
    %20 = tpu.iota {dimensions = array<i32: 1>} : vector<32x128xi32>
    %cst_17 = arith.constant -2.000000e+01 : f32
    %cst_18 = arith.constant 2.000000e+00 : f32
    %21 = vector.broadcast %cst_17 : f32 to vector<32x128xf32>
    %22 = arith.maximumf %21, %19 : vector<32x128xf32>
    %23 = vector.broadcast %cst_18 : f32 to vector<32x128xf32>
    %24 = arith.minimumf %23, %22 : vector<32x128xf32>
    %c64_i32 = arith.constant 64 : i32
    %25 = vector.broadcast %c64_i32 : i32 to vector<32x128xi32>
    %26 = arith.cmpi sge, %20, %25 : vector<32x128xi32>
    %27 = arith.select %26, %24, %19 : vector<32x128xi1>, vector<32x128xf32>
    %c0_19 = arith.constant 0 : index
    %c0_20 = arith.constant 0 : index
    %28 = vector.load %arg8[%c0_19, %c0_20] : memref<32x128xf32, #tpu.memory_space<vmem>>, vector<32x128xf32>
    tpu.vector_store %arg8[%c0_19, %c0_20], %27 {strides = array<i32>} : memref<32x128xf32, #tpu.memory_space<vmem>>, vector<32x128xf32>,
    return
  }
  func.func @transform_0(%arg0: i32) -> (i32, i32) {
    %c0_i32 = arith.constant 0 : i32
    %c0_i32_0 = arith.constant 0 : i32
    return %arg0, %c0_i32 : i32, i32
  }
  func.func @transform_1(%arg0: i32) -> (i32, i32) {
    %c0_i32 = arith.constant 0 : i32
    %c0_i32_0 = arith.constant 0 : i32
    %c0_i32_1 = arith.constant 0 : i32
    return %c0_i32, %c0_i32_0 : i32, i32
  }
  func.func @transform_2(%arg0: i32) -> (i32, i32) {
    %c0_i32 = arith.constant 0 : i32
    %c0_i32_0 = arith.constant 0 : i32
    %c0_i32_1 = arith.constant 0 : i32
    return %c0_i32, %c0_i32_0 : i32, i32
  }
  func.func @transform_3(%arg0: i32) -> (i32, i32) {
    %c0_i32 = arith.constant 0 : i32
    %c0_i32_0 = arith.constant 0 : i32
    %c0_i32_1 = arith.constant 0 : i32
    return %c0_i32, %c0_i32_0 : i32, i32
  }
  func.func @transform_4(%arg0: i32) -> (i32, i32) {
    %c0_i32 = arith.constant 0 : i32
    %c0_i32_0 = arith.constant 0 : i32
    %c0_i32_1 = arith.constant 0 : i32
    return %c0_i32, %c0_i32_0 : i32, i32
  }
  func.func @transform_5(%arg0: i32) -> (i32, i32) {
    %c0_i32 = arith.constant 0 : i32
    %c0_i32_0 = arith.constant 0 : i32
    %c0_i32_1 = arith.constant 0 : i32
    return %c0_i32, %c0_i32_0 : i32, i32
  }
  func.func @transform_6(%arg0: i32) -> (i32, i32) {
    %c0_i32 = arith.constant 0 : i32
    %c0_i32_0 = arith.constant 0 : i32
    %c0_i32_1 = arith.constant 0 : i32
    return %c0_i32, %c0_i32_0 : i32, i32
  }
  func.func @transform_7(%arg0: i32) -> (i32, i32) {
    %c0_i32 = arith.constant 0 : i32
    %c0_i32_0 = arith.constant 0 : i32
    return %arg0, %c0_i32 : i32, i32
  }
}

</mosaic_0001>

<llo_original>
// kernel: tpu_custom_call.1
$region0: #{tpu_custom_call.1}
  #allocation0 [shape = 'u32[]', space=smem, size = 0x4, offset = 0x4, fixed_abs, tag = 'smem constant byte address 0x4 - core index']
  #allocation1 [shape = 'u32[144,128]{1,0:T(1,128)}', space=vmem, size = 0x12000, scoped, tag = 'internal scratch']
  %s0 = inlined_call_operand.vmem [shape: f32[32,9], index: 0, kind: input, shape index: {}]
  %s1 = inlined_call_operand.vmem [shape: f32[9,128], index: 1, kind: input, shape index: {}]
  %s2 = inlined_call_operand.vmem [shape: f32[1,128], index: 2, kind: input, shape index: {}]
  %s3 = inlined_call_operand.hbm [shape: f32[128,128], index: 3, kind: input, shape index: {}]
  %s4 = inlined_call_operand.vmem [shape: f32[1,128], index: 4, kind: input, shape index: {}]
  %s5 = inlined_call_operand.hbm [shape: f32[128,128], index: 5, kind: input, shape index: {}]
  %s6 = inlined_call_operand.vmem [shape: f32[1,128], index: 6, kind: input, shape index: {}]
  %s7 = inlined_call_operand.hbm [shape: f32[32,128], index: 7, kind: output, shape index: {}]
  %s8 = sld [smem:[#allocation0]]
  $region46: #{tpu_custom_call.1} parent=0
    _
  %s10 = ssub.s32 1, %s8
  %s11 = scalar_select 0, %s10, %s8
  $region1: #{tpu_custom_call.1} parent=0
    #allocation2 [shape = 'u8[65536]{0}', space=vmem, size = 0x10000, scoped, tag = 'input window, operand 3, single buffered']
    #allocation3 [shape = 's32[1]{0}', space=sflag, size = 0x4, scoped, tag = 'scoped memory for tpu_custom_call.1']
    #allocation4 [shape = 's32[1]{0}', space=sflag, size = 0x4, scoped, tag = 'scoped memory for tpu_custom_call.1']
    #allocation5 [shape = 'u8[65536]{0}', space=vmem, size = 0x10000, scoped, tag = 'input window, operand 5, single buffered']
    #allocation6 [shape = 's32[1]{0}', space=sflag, size = 0x4, scoped, tag = 'scoped memory for tpu_custom_call.1']
    #allocation7 [shape = 'u8[16384]{0}', space=vmem, size = 0x4000, scoped, tag = 'output window, operand 0, single buffered']
    %12 = vsyncpa [#allocation3], 0
    %13 = vsyncpa [#allocation6], 0
    %14 = vsyncpa [#allocation4], 0
    // Predicated region
    $region2: #{tpu_custom_call.1} parent=1 // pred_check
      _
    $region3: #{tpu_custom_call.1} parent=1 // pred_check_branch
      %16 = sbr.rel (0) target = $region5
    $region4: #{tpu_custom_call.1} parent=1 // pred_region
      _
    $region5: #{tpu_custom_call.1} parent=1 // pred_fallthru
      _
    // Predicated region
    $region6: #{tpu_custom_call.1} parent=1 // pred_check
      _
    $region7: #{tpu_custom_call.1} parent=1 // pred_check_branch
      %18 = sbr.rel (0) target = $region9
    $region8: #{tpu_custom_call.1} parent=1 // pred_region
      _
    $region9: #{tpu_custom_call.1} parent=1 // pred_fallthru
      _
    // Predicated region
    $region10: #{tpu_custom_call.1} parent=1 // pred_check
      _
    $region11: #{tpu_custom_call.1} parent=1 // pred_check_branch
      %20 = sbr.rel (0) target = $region13
    $region12: #{tpu_custom_call.1} parent=1 // pred_region
      _
    $region13: #{tpu_custom_call.1} parent=1 // pred_fallthru
      _
    // Predicated region
    $region14: #{tpu_custom_call.1} parent=1 // pred_check
      _
    $region15: #{tpu_custom_call.1} parent=1 // pred_check_branch
      %22 = sbr.rel (0) target = $region17
    $region16: #{tpu_custom_call.1} parent=1 // pred_region
      %s24 = ssub.s32 2048, 2048
      %25 = vsyncadd [#allocation3], %s24
      %s26 = sshll.u32 [#allocation2], 4
      %s27 = int_to_ptr.vmem [resolvable:$true] %s26
      %32 = dma.hbm_to_vmem [thread:$0]  %s3, 2048, %s27, [#allocation3], 128, 128, 8
    $region17: #{tpu_custom_call.1} parent=1 // pred_fallthru
      _
    // Predicated region
    $region18: #{tpu_custom_call.1} parent=1 // pred_check
      _
    $region19: #{tpu_custom_call.1} parent=1 // pred_check_branch
      %34 = sbr.rel (0) target = $region21
    $region20: #{tpu_custom_call.1} parent=1 // pred_region
      _
    $region21: #{tpu_custom_call.1} parent=1 // pred_fallthru
      _
    // Predicated region
    $region22: #{tpu_custom_call.1} parent=1 // pred_check
      _
    $region23: #{tpu_custom_call.1} parent=1 // pred_check_branch
      %36 = sbr.rel (0) target = $region25
    $region24: #{tpu_custom_call.1} parent=1 // pred_region
      %s38 = ssub.s32 2048, 2048
      %39 = vsyncadd [#allocation6], %s38
      %s40 = sshll.u32 [#allocation5], 4
      %s41 = int_to_ptr.vmem [resolvable:$true] %s40
      %46 = dma.hbm_to_vmem [thread:$0]  %s5, 2048, %s41, [#allocation6], 128, 128, 8
    $region25: #{tpu_custom_call.1} parent=1 // pred_fallthru
      _
    // Predicated region
    $region26: #{tpu_custom_call.1} parent=1 // pred_check
      _
    $region27: #{tpu_custom_call.1} parent=1 // pred_check_branch
      %48 = sbr.rel (0) target = $region29
    $region28: #{tpu_custom_call.1} parent=1 // pred_region
      _
    $region29: #{tpu_custom_call.1} parent=1 // pred_fallthru
      _
    // Predicated region
    $region30: #{tpu_custom_call.1} parent=1 // pred_check
      _
    $region31: #{tpu_custom_call.1} parent=1 // pred_check_branch
      %50 = sbr.rel (0) target = $region33
    $region32: #{tpu_custom_call.1} parent=1 // pred_region
      %51 = dma.done [#allocation3], 2048
    $region33: #{tpu_custom_call.1} parent=1 // pred_fallthru
      _
    // Predicated region
    $region34: #{tpu_custom_call.1} parent=1 // pred_check
      _
    $region35: #{tpu_custom_call.1} parent=1 // pred_check_branch
      %53 = sbr.rel (0) target = $region37
    $region36: #{tpu_custom_call.1} parent=1 // pred_region
      %54 = dma.done [#allocation6], 2048
    $region37: #{tpu_custom_call.1} parent=1 // pred_fallthru
      _
    %v55 = vld [vmem:[%s0] sm:$0xff]
    %v56 = vld [vmem:[%s0 + $0x8] sm:$0xff]
    %v57 = vld [vmem:[%s0 + $0x10] sm:$0xff]
    %v58 = vld [vmem:[%s0 + $0x18] sm:$0xff]
    %v59 = vld [vmem:[%s1] sm:$0xff]
    %v60 = vld [vmem:[%s1 + $0x8] sm:$0x1]
    %v61 = vld [vmem:[%s2] sm:$0x1]
    %v63 = vlaneseq
    %v64 = vshrl.u32 %v63, 7
    %v65 = vsub.s32 0, %v64
    %v66 = vrot.slane %v61, %v65
    %vm68 = vcmask 72704
    %v70 = vsel %vm68, %v55, 0
    %v73 = vsel %vm68, %v56, 0
    %v76 = vsel %vm68, %v57, 0
    %v79 = vsel %vm68, %v58, 0
    %vm81 = vcmask 1040384
    %v83 = vsel %vm81, %v60, 0
    %85 = vmatprep.subr.mxu0 0.0
    %86 = vmatpush1.msra.mxu0 %v59
    %87 = vmatprep.subr.mxu0 0.0
    %88 = vmatpush1.msra.mxu0 %v83
    %89 = vmatprep.subr.mxu0 0.0
    %90 = vmatpush1.msra.mxu0 0.0
    %91 = vmatprep.subr.mxu0 0.0
    %92 = vmatpush1.msra.mxu0 0.0
    %93 = vmatprep.subr.mxu0 0.0
    %94 = vmatpush1.msra.mxu0 0.0
    %95 = vmatprep.subr.mxu0 0.0
    %96 = vmatpush1.msra.mxu0 0.0
    %97 = vmatprep.subr.mxu0 0.0
    %98 = vmatpush1.msra.mxu0 0.0
    %99 = vmatprep.subr.mxu0 0.0
    %100 = vmatpush1.msra.mxu0 0.0
    %101 = vmatprep.subr.mxu0 0.0
    %102 = vmatpush1.msra.mxu0 0.0
    %103 = vmatprep.subr.mxu0 0.0
    %104 = vmatpush1.msra.mxu0 0.0
    %105 = vmatprep.subr.mxu0 0.0
    %106 = vmatpush1.msra.mxu0 0.0
    %107 = vmatprep.subr.mxu0 0.0
    %108 = vmatpush1.msra.mxu0 0.0
    %109 = vmatprep.subr.mxu0 0.0
    %110 = vmatpush1.msra.mxu0 0.0
    %111 = vmatprep.subr.mxu0 0.0
    %112 = vmatpush1.msra.mxu0 0.0
    %113 = vmatprep.subr.mxu0 0.0
    %114 = vmatpush1.msra.mxu0 0.0
    %115 = vmatprep.subr.mxu0 0.0
    %116 = vmatpush1.msra.mxu0 0.0
    %117 = vmatprep.subr.mxu0 0.0
    %118 = vmatpush1.msra.mxu0 0.0
    %119 = vmatprep.subr.mxu0 0.0
    %120 = vmatpush1.msra.mxu0 0.0
    %121 = vmatprep.subr.mxu0 0.0
    %122 = vmatpush1.msra.mxu0 0.0
    %123 = vmatprep.subr.mxu0 0.0
    %124 = vmatpush1.msra.mxu0 0.0
    %125 = vmatprep.subr.mxu0 0.0
    %126 = vmatpush1.msra.mxu0 0.0
    %127 = vmatprep.subr.mxu0 0.0
    %128 = vmatpush1.msra.mxu0 0.0
    %129 = vmatprep.subr.mxu0 0.0
    %130 = vmatpush1.msra.mxu0 0.0
    %131 = vmatprep.subr.mxu0 0.0
    %132 = vmatpush1.msra.mxu0 0.0
    %133 = vmatprep.subr.mxu0 0.0
    %134 = vmatpush1.msra.mxu0 0.0
    %135 = vmatprep.subr.mxu0 0.0
    %136 = vmatpush1.msra.mxu0 0.0
    %137 = vmatprep.subr.mxu0 0.0
    %138 = vmatpush1.msra.mxu0 0.0
    %139 = vmatprep.subr.mxu0 0.0
    %140 = vmatpush1.msra.mxu0 0.0
    %141 = vmatprep.subr.mxu0 0.0
    %142 = vmatpush1.msra.mxu0 0.0
    %143 = vmatprep.subr.mxu0 0.0
    %144 = vmatpush1.msra.mxu0 0.0
    %145 = vmatprep.subr.mxu0 0.0
    %146 = vmatpush1.msra.mxu0 0.0
    %147 = vmatprep.subr.mxu0 0.0
    %148 = vmatpush1.msra.mxu0 0.0
    %149 = vmatprep.mubr.f32.mxu0 0.0
    %150 = vmatmul.mubr.f32.gmra.mrb[0].mxu0 %v70
    %v151 = vpop.f32.mrb[0].mxu0
    %v152 = vadd.f32 %v66, %v151
    %v153 = vpop.f32.mrb[0].mxu0
    %154 = vmatprep.mubr.f32.mxu0 0.0
    %155 = vmatmul.mubr.f32.gmra.mrb[0].mxu0 %v73
    %v156 = vpop.f32.mrb[0].mxu0
    %v157 = vadd.f32 %v66, %v156
    %v158 = vpop.f32.mrb[0].mxu0
    %159 = vmatprep.mubr.f32.mxu0 0.0
    %160 = vmatmul.mubr.f32.gmra.mrb[0].mxu0 %v76
    %v161 = vpop.f32.mrb[0].mxu0
    %v162 = vadd.f32 %v66, %v161
    %v163 = vpop.f32.mrb[0].mxu0
    %164 = vmatprep.mubr.f32.mxu0 0.0
    %165 = vmatmul.mubr.f32.gmra.mrb[0].mxu0 %v79
    %v166 = vpop.f32.mrb[0].mxu0
    %v167 = vadd.f32 %v66, %v166
    %v168 = vpop.f32.mrb[0].mxu0
    %169 = vdwg.mxu0
    %v170 = vmax.f32 %v152, 0.0
    %v171 = vmax.f32 %v157, 0.0
    %v172 = vmax.f32 %v162, 0.0
    %v173 = vmax.f32 %v167, 0.0
    %v174 = vld [vmem:[#allocation2] sm:$0xff]
    %v175 = vld [vmem:[#allocation2 + $0x8] sm:$0xff]
    %v176 = vld [vmem:[#allocation2 + $0x10] sm:$0xff]
    %v177 = vld [vmem:[#allocation2 + $0x18] sm:$0xff]
    %v178 = vld [vmem:[#allocation2 + $0x20] sm:$0xff]
    %v179 = vld [vmem:[#allocation2 + $0x28] sm:$0xff]
    %v180 = vld [vmem:[#allocation2 + $0x30] sm:$0xff]
    %v181 = vld [vmem:[#allocation2 + $0x38] sm:$0xff]
    %v182 = vld [vmem:[#allocation2 + $0x40] sm:$0xff]
    %v183 = vld [vmem:[#allocation2 + $0x48] sm:$0xff]
    %v184 = vld [vmem:[#allocation2 + $0x50] sm:$0xff]
    %v185 = vld [vmem:[#allocation2 + $0x58] sm:$0xff]
    %v186 = vld [vmem:[#allocation2 + $0x60] sm:$0xff]
    %v187 = vld [vmem:[#allocation2 + $0x68] sm:$0xff]
    %v188 = vld [vmem:[#allocation2 + $0x70] sm:$0xff]
    %v189 = vld [vmem:[#allocation2 + $0x78] sm:$0xff]
    %v190 = vld [vmem:[%s4] sm:$0x1]
    %v192 = vlaneseq
    %v193 = vshrl.u32 %v192, 7
    %v194 = vsub.s32 0, %v193
    %v195 = vrot.slane %v190, %v194
    %197 = vmatprep.subr.mxu0 0.0
    %198 = vmatpush1.msra.mxu0 %v174
    %199 = vmatprep.subr.mxu0 0.0
    %200 = vmatpush1.msra.mxu0 %v175
    %201 = vmatprep.subr.mxu0 0.0
    %202 = vmatpush1.msra.mxu0 %v176
    %203 = vmatprep.subr.mxu0 0.0
    %204 = vmatpush1.msra.mxu0 %v177
    %205 = vmatprep.subr.mxu0 0.0
    %206 = vmatpush1.msra.mxu0 %v178
    %207 = vmatprep.subr.mxu0 0.0
    %208 = vmatpush1.msra.mxu0 %v179
    %209 = vmatprep.subr.mxu0 0.0
    %210 = vmatpush1.msra.mxu0 %v180
    %211 = vmatprep.subr.mxu0 0.0
    %212 = vmatpush1.msra.mxu0 %v181
    %213 = vmatprep.subr.mxu0 0.0
    %214 = vmatpush1.msra.mxu0 %v182
    %215 = vmatprep.subr.mxu0 0.0
    %216 = vmatpush1.msra.mxu0 %v183
    %217 = vmatprep.subr.mxu0 0.0
    %218 = vmatpush1.msra.mxu0 %v184
    %219 = vmatprep.subr.mxu0 0.0
    %220 = vmatpush1.msra.mxu0 %v185
    %221 = vmatprep.subr.mxu0 0.0
    %222 = vmatpush1.msra.mxu0 %v186
    %223 = vmatprep.subr.mxu0 0.0
    %224 = vmatpush1.msra.mxu0 %v187
    %225 = vmatprep.subr.mxu0 0.0
    %226 = vmatpush1.msra.mxu0 %v188
    %227 = vmatprep.subr.mxu0 0.0
    %228 = vmatpush1.msra.mxu0 %v189
    %229 = vmatprep.subr.mxu0 0.0
    %230 = vmatpush1.msra.mxu0 0.0
    %231 = vmatprep.subr.mxu0 0.0
    %232 = vmatpush1.msra.mxu0 0.0
    %233 = vmatprep.subr.mxu0 0.0
    %234 = vmatpush1.msra.mxu0 0.0
    %235 = vmatprep.subr.mxu0 0.0
    %236 = vmatpush1.msra.mxu0 0.0
    %237 = vmatprep.subr.mxu0 0.0
    %238 = vmatpush1.msra.mxu0 0.0
    %239 = vmatprep.subr.mxu0 0.0
    %240 = vmatpush1.msra.mxu0 0.0
    %241 = vmatprep.subr.mxu0 0.0
    %242 = vmatpush1.msra.mxu0 0.0
    %243 = vmatprep.subr.mxu0 0.0
    %244 = vmatpush1.msra.mxu0 0.0
    %245 = vmatprep.subr.mxu0 0.0
    %246 = vmatpush1.msra.mxu0 0.0
    %247 = vmatprep.subr.mxu0 0.0
    %248 = vmatpush1.msra.mxu0 0.0
    %249 = vmatprep.subr.mxu0 0.0
    %250 = vmatpush1.msra.mxu0 0.0
    %251 = vmatprep.subr.mxu0 0.0
    %252 = vmatpush1.msra.mxu0 0.0
    %253 = vmatprep.subr.mxu0 0.0
    %254 = vmatpush1.msra.mxu0 0.0
    %255 = vmatprep.subr.mxu0 0.0
    %256 = vmatpush1.msra.mxu0 0.0
    %257 = vmatprep.subr.mxu0 0.0
    %258 = vmatpush1.msra.mxu0 0.0
    %259 = vmatprep.subr.mxu0 0.0
    %260 = vmatpush1.msra.mxu0 0.0
    %261 = vmatprep.mubr.f32.mxu0 0.0
    %262 = vmatmul.mubr.f32.gmra.mrb[0].mxu0 %v170
    %v263 = vpop.f32.mrb[0].mxu0
    %v264 = vadd.f32 %v195, %v263
    %v265 = vpop.f32.mrb[0].mxu0
    %266 = vmatprep.mubr.f32.mxu0 0.0
    %267 = vmatmul.mubr.f32.gmra.mrb[0].mxu0 %v171
    %v268 = vpop.f32.mrb[0].mxu0
    %v269 = vadd.f32 %v195, %v268
    %v270 = vpop.f32.mrb[0].mxu0
    %271 = vmatprep.mubr.f32.mxu0 0.0
    %272 = vmatmul.mubr.f32.gmra.mrb[0].mxu0 %v172
    %v273 = vpop.f32.mrb[0].mxu0
    %v274 = vadd.f32 %v195, %v273
    %v275 = vpop.f32.mrb[0].mxu0
    %276 = vmatprep.mubr.f32.mxu0 0.0
    %277 = vmatmul.mubr.f32.gmra.mrb[0].mxu0 %v173
    %v278 = vpop.f32.mrb[0].mxu0
    %v279 = vadd.f32 %v195, %v278
    %v280 = vpop.f32.mrb[0].mxu0
    %281 = vdwg.mxu0
    %v282 = vmax.f32 %v264, 0.0
    %v283 = vmax.f32 %v269, 0.0
    %v284 = vmax.f32 %v274, 0.0
    %v285 = vmax.f32 %v279, 0.0
    %v286 = vld [vmem:[#allocation5] sm:$0xff]
    %v287 = vld [vmem:[#allocation5 + $0x8] sm:$0xff]
    %v288 = vld [vmem:[#allocation5 + $0x10] sm:$0xff]
    %v289 = vld [vmem:[#allocation5 + $0x18] sm:$0xff]
    %v290 = vld [vmem:[#allocation5 + $0x20] sm:$0xff]
    %v291 = vld [vmem:[#allocation5 + $0x28] sm:$0xff]
    %v292 = vld [vmem:[#allocation5 + $0x30] sm:$0xff]
    %v293 = vld [vmem:[#allocation5 + $0x38] sm:$0xff]
    %v294 = vld [vmem:[#allocation5 + $0x40] sm:$0xff]
    %v295 = vld [vmem:[#allocation5 + $0x48] sm:$0xff]
    %v296 = vld [vmem:[#allocation5 + $0x50] sm:$0xff]
    %v297 = vld [vmem:[#allocation5 + $0x58] sm:$0xff]
    %v298 = vld [vmem:[#allocation5 + $0x60] sm:$0xff]
    %v299 = vld [vmem:[#allocation5 + $0x68] sm:$0xff]
    %v300 = vld [vmem:[#allocation5 + $0x70] sm:$0xff]
    %v301 = vld [vmem:[#allocation5 + $0x78] sm:$0xff]
    %v302 = vld [vmem:[%s6] sm:$0x1]
    %v304 = vlaneseq
    %v305 = vshrl.u32 %v304, 7
    %v306 = vsub.s32 0, %v305
    %v307 = vrot.slane %v302, %v306
    %309 = vmatprep.subr.mxu0 0.0
    %310 = vmatpush1.msra.mxu0 %v286
    %311 = vmatprep.subr.mxu0 0.0
    %312 = vmatpush1.msra.mxu0 %v287
    %313 = vmatprep.subr.mxu0 0.0
    %314 = vmatpush1.msra.mxu0 %v288
    %315 = vmatprep.subr.mxu0 0.0
    %316 = vmatpush1.msra.mxu0 %v289
    %317 = vmatprep.subr.mxu0 0.0
    %318 = vmatpush1.msra.mxu0 %v290
    %319 = vmatprep.subr.mxu0 0.0
    %320 = vmatpush1.msra.mxu0 %v291
    %321 = vmatprep.subr.mxu0 0.0
    %322 = vmatpush1.msra.mxu0 %v292
    %323 = vmatprep.subr.mxu0 0.0
    %324 = vmatpush1.msra.mxu0 %v293
    %325 = vmatprep.subr.mxu0 0.0
    %326 = vmatpush1.msra.mxu0 %v294
    %327 = vmatprep.subr.mxu0 0.0
    %328 = vmatpush1.msra.mxu0 %v295
    %329 = vmatprep.subr.mxu0 0.0
    %330 = vmatpush1.msra.mxu0 %v296
    %331 = vmatprep.subr.mxu0 0.0
    %332 = vmatpush1.msra.mxu0 %v297
    %333 = vmatprep.subr.mxu0 0.0
    %334 = vmatpush1.msra.mxu0 %v298
    %335 = vmatprep.subr.mxu0 0.0
    %336 = vmatpush1.msra.mxu0 %v299
    %337 = vmatprep.subr.mxu0 0.0
    %338 = vmatpush1.msra.mxu0 %v300
    %339 = vmatprep.subr.mxu0 0.0
    %340 = vmatpush1.msra.mxu0 %v301
    %341 = vmatprep.subr.mxu0 0.0
    %342 = vmatpush1.msra.mxu0 0.0
    %343 = vmatprep.subr.mxu0 0.0
    %344 = vmatpush1.msra.mxu0 0.0
    %345 = vmatprep.subr.mxu0 0.0
    %346 = vmatpush1.msra.mxu0 0.0
    %347 = vmatprep.subr.mxu0 0.0
    %348 = vmatpush1.msra.mxu0 0.0
    %349 = vmatprep.subr.mxu0 0.0
    %350 = vmatpush1.msra.mxu0 0.0
    %351 = vmatprep.subr.mxu0 0.0
    %352 = vmatpush1.msra.mxu0 0.0
    %353 = vmatprep.subr.mxu0 0.0
    %354 = vmatpush1.msra.mxu0 0.0
    %355 = vmatprep.subr.mxu0 0.0
    %356 = vmatpush1.msra.mxu0 0.0
    %357 = vmatprep.subr.mxu0 0.0
    %358 = vmatpush1.msra.mxu0 0.0
    %359 = vmatprep.subr.mxu0 0.0
    %360 = vmatpush1.msra.mxu0 0.0
    %361 = vmatprep.subr.mxu0 0.0
    %362 = vmatpush1.msra.mxu0 0.0
    %363 = vmatprep.subr.mxu0 0.0
    %364 = vmatpush1.msra.mxu0 0.0
    %365 = vmatprep.subr.mxu0 0.0
    %366 = vmatpush1.msra.mxu0 0.0
    %367 = vmatprep.subr.mxu0 0.0
    %368 = vmatpush1.msra.mxu0 0.0
    %369 = vmatprep.subr.mxu0 0.0
    %370 = vmatpush1.msra.mxu0 0.0
    %371 = vmatprep.subr.mxu0 0.0
    %372 = vmatpush1.msra.mxu0 0.0
    %373 = vmatprep.mubr.f32.mxu0 0.0
    %374 = vmatmul.mubr.f32.gmra.mrb[0].mxu0 %v282
    %v375 = vpop.f32.mrb[0].mxu0
    %v376 = vadd.f32 %v307, %v375
    %v377 = vpop.f32.mrb[0].mxu0
    %378 = vmatprep.mubr.f32.mxu0 0.0
    %379 = vmatmul.mubr.f32.gmra.mrb[0].mxu0 %v283
    %v380 = vpop.f32.mrb[0].mxu0
    %v381 = vadd.f32 %v307, %v380
    %v382 = vpop.f32.mrb[0].mxu0
    %383 = vmatprep.mubr.f32.mxu0 0.0
    %384 = vmatmul.mubr.f32.gmra.mrb[0].mxu0 %v284
    %v385 = vpop.f32.mrb[0].mxu0
    %v386 = vadd.f32 %v307, %v385
    %v387 = vpop.f32.mrb[0].mxu0
    %388 = vmatprep.mubr.f32.mxu0 0.0
    %389 = vmatmul.mubr.f32.gmra.mrb[0].mxu0 %v285
    %v390 = vpop.f32.mrb[0].mxu0
    %v391 = vadd.f32 %v307, %v390
    %v392 = vpop.f32.mrb[0].mxu0
    %393 = vdwg.mxu0
    %v394 = vlaneseq
    %v395 = vand.u32 %v394, 127
    %v396 = vmax.f32 %v376, -20.0
    %v397 = vmax.f32 %v381, -20.0
    %v398 = vmax.f32 %v386, -20.0
    %v399 = vmax.f32 %v391, -20.0
    %v400 = vmin.f32 %v396, 2.0
    %v401 = vmin.f32 %v397, 2.0
    %v402 = vmin.f32 %v398, 2.0
    %v403 = vmin.f32 %v399, 2.0
    %vm404 = vcmp.ge.s32.totalorder %v395, 64
    %v405 = vsel %vm404, %v400, %v376
    %v406 = vsel %vm404, %v401, %v381
    %v407 = vsel %vm404, %v402, %v386
    %v408 = vsel %vm404, %v403, %v391
    %409 = vst [vmem:[#allocation7] sm:$0xff] %v405
    %410 = vst [vmem:[#allocation7 + $0x8] sm:$0xff] %v406
    %411 = vst [vmem:[#allocation7 + $0x10] sm:$0xff] %v407
    %412 = vst [vmem:[#allocation7 + $0x18] sm:$0xff] %v408
    // Predicated region
    $region38: #{tpu_custom_call.1} parent=1 // pred_check
      _
    $region39: #{tpu_custom_call.1} parent=1 // pred_check_branch
      %414 = sbr.rel (0) target = $region41
    $region40: #{tpu_custom_call.1} parent=1 // pred_region
      %s416 = ssub.s32 512, 512
      %417 = vsyncadd [#allocation4], %s416
      %s418 = sshll.u32 [#allocation7], 4
      %s419 = int_to_ptr.vmem [resolvable:$true] %s418
      %424 = dma.vmem_to_hbm [thread:$0]  %s419, 512, %s7, [#allocation4], 128, 128, 8
    $region41: #{tpu_custom_call.1} parent=1 // pred_fallthru
      _
    // Predicated region
    $region42: #{tpu_custom_call.1} parent=1 // pred_check
      _
    $region43: #{tpu_custom_call.1} parent=1 // pred_check_branch
      %426 = sbr.rel (0) target = $region45
    $region44: #{tpu_custom_call.1} parent=1 // pred_region
      %427 = dma.done [#allocation4], 512
    $region45: #{tpu_custom_call.1} parent=1 // pred_fallthru
      _
    %428 = vsyncpa [#allocation3], 1
    %429 = vsyncpa [#allocation6], 1
    %430 = vsyncpa [#allocation4], 1

</llo_original>
